<compile_context>
chip_gen: v7x
topology: tpu7x:2x2x1
jax: 0.10.0
libtpu: 0.0.40
codegen_flags: <defaults>
</compile_context>

<pallas_src>
import functools

import jax
import jax.numpy as jnp
from jax.experimental import pallas as pl
from jax.experimental.pallas import tpu as pltpu


# ----------------------------- Pallas kernel ------------------------------ #
def _dynamics_kernel(
    x_ref,
    w1_ref, b1_ref,          # fc_dynamics layer 1 (BN + bias folded in)
    w2_ref, b2_ref,          # fc_dynamics layer 2 (BN + bias folded in)
    w3_ref, b3_ref,          # reward head hidden layer (BN + bias folded in)
    w4_ref, b4_ref,          # reward head output layer (lane-padded to 640)
    next_ref, reward_ref,
):
    x = x_ref[...]                                                    # (tb, 64)

    # fc_dynamics: (Linear + folded BN) -> ReLU, twice.  f32 accumulation.
    h = jnp.dot(x, w1_ref[...], preferred_element_type=jnp.float32) + b1_ref[...]
    h = jnp.maximum(h, 0.0)                                           # (tb, 128)

    h = jnp.dot(h.astype(w2_ref.dtype), w2_ref[...],
                preferred_element_type=jnp.float32) + b2_ref[...]
    h = jnp.maximum(h, 0.0)                                           # (tb, 128)

    next_ref[...] = h.astype(next_ref.dtype)                          # padded next latent

    # fc_reward_head: (Linear + folded BN) -> ReLU, then final Linear.
    r = jnp.dot(h.astype(w3_ref.dtype), w3_ref[...],
                preferred_element_type=jnp.float32) + b3_ref[...]
    r = jnp.maximum(r, 0.0)                                           # (tb, 128)

    reward = jnp.dot(r.astype(w4_ref.dtype), w4_ref[...],
                     preferred_element_type=jnp.float32) + b4_ref[...]
    reward_ref[...] = reward.astype(reward_ref.dtype)                 # (tb, 640)


# ------------------------------- wrapper ----------------------------------- #
@functools.partial(
    jax.jit, static_argnames=("latent_dim", "support_size", "reward_dtype"))
def dynamics_network_forward(x, params, *, latent_dim=62, support_size=601,
                             reward_dtype=jnp.bfloat16):
    """x: (B, num_channels) float32.  params: folded/padded dict (prepare_params).

    Returns (next_latent_state (B, latent_dim) f32, reward (B, support_size)
    in `reward_dtype`).
    """
    batch = x.shape[0]
    in_dim = x.shape[1]
    lat_pad = params["w2"].shape[1]       # 128
    sup_pad = params["w4"].shape[1]       # 640

    w_dtype = params["w1"].dtype
    any_bf16 = (w_dtype == jnp.bfloat16) or (jnp.dtype(reward_dtype) == jnp.bfloat16)
    sub = 16 if any_bf16 else 8           # bf16 min tile is (16, 128)

    # --- batch tiling ------------------------------------------------------
    # Large tiles (<=1024) amortize per-grid-step overhead while staying well
    # under v5e's 16 MiB scoped-VMEM default; split into >=2 tiles whenever
    # possible so "parallel" can use both v7x TensorCores.
    b_pad = max(sub, -(-batch // sub) * sub)
    if b_pad >= 2 * sub:
        half = -(-(-(-b_pad // 2)) // sub) * sub        # ceil(b_pad/2) rounded to sub
        tile_b = min(1024, half)
    else:
        tile_b = b_pad
    b_pad = -(-b_pad // tile_b) * tile_b
    n_tiles = b_pad // tile_b

    if b_pad != batch:
        x = jnp.pad(x, ((0, b_pad - batch), (0, 0)))
    x = x.astype(w_dtype)

    out_shapes = (
        jax.ShapeDtypeStruct((b_pad, lat_pad), jnp.float32),    # next latent (padded)
        jax.ShapeDtypeStruct((b_pad, sup_pad), reward_dtype),   # reward logits (padded)
    )

    # Weights / biases: full-array blocks with a constant index_map so they
    # stay VMEM-resident across batch tiles.
    def const_spec(shape):
        return pl.BlockSpec(shape, lambda i: (0, 0))

    in_specs = [
        pl.BlockSpec((tile_b, in_dim), lambda i: (i, 0)),
        const_spec(params["w1"].shape), const_spec(params["b1"].shape),
        const_spec(params["w2"].shape), const_spec(params["b2"].shape),
        const_spec(params["w3"].shape), const_spec(params["b3"].shape),
        const_spec(params["w4"].shape), const_spec(params["b4"].shape),
    ]
    out_specs = (
        pl.BlockSpec((tile_b, lat_pad), lambda i: (i, 0)),
        pl.BlockSpec((tile_b, sup_pad), lambda i: (i, 0)),
    )

    next_pad, reward_pad = pl.pallas_call(
        _dynamics_kernel,
        out_shape=out_shapes,
        grid=(n_tiles,),
        in_specs=in_specs,
        out_specs=out_specs,
        compiler_params=pltpu.CompilerParams(
            dimension_semantics=("parallel",),
        ),
    )(
        x,
        params["w1"], params["b1"],
        params["w2"], params["b2"],
        params["w3"], params["b3"],
        params["w4"], params["b4"],
    )

    # Slice away batch / lane padding outside the kernel.
    next_latent_state = next_pad[:batch, :latent_dim]
    reward = reward_pad[:batch, :support_size]
    return next_latent_state, reward


# --------------------------- parameter creation ----------------------------- #
def _linear_init(key, fan_in, fan_out):
    """PyTorch-style uniform(-1/sqrt(fan_in), 1/sqrt(fan_in)) init."""
    kw, kb = jax.random.split(key)
    bound = 1.0 / jnp.sqrt(jnp.float32(fan_in))
    w = jax.random.uniform(kw, (fan_in, fan_out), jnp.float32, -bound, bound)
    b = jax.random.uniform(kb, (1, fan_out), jnp.float32, -bound, bound)
    return w, b


def _bn_fold(dim, eps=1e-5):
    """Fold eval-mode BatchNorm1d (default init) into per-feature scale/shift."""
    gamma = jnp.ones((1, dim), jnp.float32)
    beta = jnp.zeros((1, dim), jnp.float32)
    running_mean = jnp.zeros((1, dim), jnp.float32)
    running_var = jnp.ones((1, dim), jnp.float32)
    scale = gamma / jnp.sqrt(running_var + eps)
    shift = beta - running_mean * scale
    return scale, shift


def init_raw_params(
    key,
    action_encoding_dim=2,
    num_channels=64,
    reward_head_hidden=32,
    output_support_size=601,
    last_linear_layer_init_zero=True,
):
    """Raw (un-folded, un-padded) params mirroring the PyTorch module."""
    latent_dim = num_channels - action_encoding_dim                  # 62
    k1, k2, k3, k4 = jax.random.split(key, 4)

    w1, b1 = _linear_init(k1, num_channels, latent_dim)
    w2, b2 = _linear_init(k2, latent_dim, latent_dim)
    w3, b3 = _linear_init(k3, latent_dim, reward_head_hidden)
    if last_linear_layer_init_zero:
        w4 = jnp.zeros((reward_head_hidden, output_support_size), jnp.float32)
        b4 = jnp.zeros((1, output_support_size), jnp.float32)
    else:
        w4, b4 = _linear_init(k4, reward_head_hidden, output_support_size)

    return dict(w1=w1, b1=b1, w2=w2, b2=b2, w3=w3, b3=b3, w4=w4, b4=b4)


def _pad_cols(a, to):
    return jnp.pad(a, ((0, 0), (0, to - a.shape[1])))


def _pad_rows(a, to):
    return jnp.pad(a, ((0, to - a.shape[0]), (0, 0)))


def prepare_params(raw, *, latent_pad=128, hidden_pad=128, support_pad=640,
                   dtype=jnp.bfloat16):
    """Fold eval-mode BN + Linear bias into the weights and zero-pad every
    feature dim to a lane-dense multiple of 128 (support rounds to 640).
    Padded rows/cols are exactly zero, so padded activation lanes remain zero
    through the ReLU chain and contribute nothing downstream.

    dtype=bf16 (default) targets v6e/v7x bf16 MXU feeds; use jnp.float32 on
    v5e or when exact f32 reproduction is required.  Biases stay f32 (added to
    the f32 accumulator).
    """
    latent_dim = raw["w1"].shape[1]
    hidden_dim = raw["w3"].shape[1]

    s1, t1 = _bn_fold(latent_dim)
    s2, t2 = _bn_fold(latent_dim)
    s3, t3 = _bn_fold(hidden_dim)

    # Fold: x @ (W * s) + (b * s + t)  ==  (x @ W + b) * s + t
    w1 = raw["w1"] * s1
    b1 = raw["b1"] * s1 + t1
    w2 = raw["w2"] * s2
    b2 = raw["b2"] * s2 + t2
    w3 = raw["w3"] * s3
    b3 = raw["b3"] * s3 + t3
    w4 = raw["w4"]
    b4 = raw["b4"]

    # Zero-pad feature dims to lane-dense shapes.
    w1 = _pad_cols(w1, latent_pad)                            # (64, 128)
    b1 = _pad_cols(b1, latent_pad)                            # (1, 128)
    w2 = _pad_cols(_pad_rows(w2, latent_pad), latent_pad)     # (128, 128)
    b2 = _pad_cols(b2, latent_pad)                            # (1, 128)
    w3 = _pad_cols(_pad_rows(w3, latent_pad), hidden_pad)     # (128, 128)
    b3 = _pad_cols(b3, hidden_pad)                            # (1, 128)
    w4 = _pad_cols(_pad_rows(w4, hidden_pad), support_pad)    # (128, 640)
    b4 = _pad_cols(b4, support_pad)                           # (1, 640)

    p = dict(w1=w1, b1=b1, w2=w2, b2=b2, w3=w3, b3=b3, w4=w4, b4=b4)
    # Weights may be bf16; biases stay f32 (added to the f32 accumulator).
    for k in ("w1", "w2", "w3", "w4"):
        p[k] = p[k].astype(dtype)
    return p


# ----------------------------- pure-JAX reference --------------------------- #
def reference_forward(x, raw):
    """Matches the PyTorch module in eval mode (Linear -> BN -> ReLU, ...)."""
    latent_dim = raw["w1"].shape[1]
    hidden_dim = raw["w3"].shape[1]
    s1, t1 = _bn_fold(latent_dim)
    s2, t2 = _bn_fold(latent_dim)
    s3, t3 = _bn_fold(hidden_dim)

    h = jnp.maximum((x @ raw["w1"] + raw["b1"]) * s1 + t1, 0.0)
    h = jnp.maximum((h @ raw["w2"] + raw["b2"]) * s2 + t2, 0.0)
    r = jnp.maximum((h @ raw["w3"] + raw["b3"]) * s3 + t3, 0.0)
    return h, r @ raw["w4"] + raw["b4"]


if __name__ == "__main__":
    key = jax.random.PRNGKey(0)
    k_params, k_x1, k_x2 = jax.random.split(key, 3)

    NUM_CHANNELS = 64          # latent_state_dim (62) + action_encoding_dim (2)
    LATENT_DIM = 62
    SUPPORT = 601

    raw = init_raw_params(k_params, last_linear_layer_init_zero=False)

    # ---- exact path: f32 weights + f32 outputs (tight tolerance) ----------
    params_f32 = prepare_params(raw, dtype=jnp.float32)
    x1 = jax.random.normal(k_x1, (8, NUM_CHANNELS), jnp.float32)
    nl1, rw1 = dynamics_network_forward(
        x1, params_f32, latent_dim=LATENT_DIM, support_size=SUPPORT,
        reward_dtype=jnp.float32)
    nl1 = jax.block_until_ready(nl1)
    rw1 = jax.block_until_ready(rw1)
    ref_nl1, ref_rw1 = reference_forward(x1, raw)
    assert nl1.shape == (8, LATENT_DIM)
    assert rw1.shape == (8, SUPPORT)
    assert jnp.allclose(nl1, ref_nl1, atol=1e-4, rtol=1e-4)
    assert jnp.allclose(rw1, ref_rw1, atol=1e-4, rtol=1e-4)

    # ---- fast path (default): bf16 weights + bf16 reward, multi-tile grid --
    params_bf16 = prepare_params(raw)                       # bf16 weights
    x2 = jax.random.normal(k_x2, (40, NUM_CHANNELS), jnp.float32)
    nl2, rw2 = dynamics_network_forward(
        x2, params_bf16, latent_dim=LATENT_DIM, support_size=SUPPORT)
    nl2 = jax.block_until_ready(nl2)
    rw2 = jax.block_until_ready(rw2)
    ref_nl2, ref_rw2 = reference_forward(x2, raw)
    assert nl2.shape == (40, LATENT_DIM)
    assert rw2.shape == (40, SUPPORT)
    assert rw2.dtype == jnp.bfloat16
    assert jnp.allclose(nl2, ref_nl2, atol=5e-2, rtol=5e-2)
    assert jnp.allclose(rw2.astype(jnp.float32), ref_rw2, atol=5e-2, rtol=5e-2)

    print("KERNEL_OK")
</pallas_src>

<mosaic_0001>
module attributes {stable_mosaic.version = 11 : i64} {
  func.func @_dynamics_kernel(%arg0: i32, %arg1: memref<8x64xf32, #tpu.memory_space<vmem>>, %arg2: memref<64x128xf32, #tpu.memory_space<vmem>>, %arg3: memref<1x128xf32, #tpu.memory_space<vmem>>, %arg4: memref<128x128xf32, #tpu.memory_space<vmem>>, %arg5: memref<1x128xf32, #tpu.memory_space<vmem>>, %arg6: memref<128x128xf32, #tpu.memory_space<vmem>>, %arg7: memref<1x128xf32, #tpu.memory_space<vmem>>, %arg8: memref<128x640xf32, #tpu.memory_space<vmem>>, %arg9: memref<1x640xf32, #tpu.memory_space<vmem>>, %arg10: memref<8x128xf32, #tpu.memory_space<vmem>>, %arg11: memref<8x640xf32, #tpu.memory_space<vmem>>) attributes {dimension_semantics = [#tpu.dimension_semantics<parallel>], iteration_bounds = array<i64: 1>, scalar_prefetch = 0 : i64, scratch_operands = 0 : i64, tpu.core_type = #tpu.core_type<tc>, window_params = [{transform_indices = @transform_0, window_bounds = array<i64: 8, 64>}, {pipeline_mode = #tpu.pipeline_mode<synchronous>, transform_indices = @transform_1, window_bounds = array<i64: 64, 128>}, {pipeline_mode = #tpu.pipeline_mode<synchronous>, transform_indices = @transform_2, window_bounds = array<i64: 1, 128>}, {pipeline_mode = #tpu.pipeline_mode<synchronous>, transform_indices = @transform_3, window_bounds = array<i64: 128, 128>}, {pipeline_mode = #tpu.pipeline_mode<synchronous>, transform_indices = @transform_4, window_bounds = array<i64: 1, 128>}, {pipeline_mode = #tpu.pipeline_mode<synchronous>, transform_indices = @transform_5, window_bounds = array<i64: 128, 128>}, {pipeline_mode = #tpu.pipeline_mode<synchronous>, transform_indices = @transform_6, window_bounds = array<i64: 1, 128>}, {pipeline_mode = #tpu.pipeline_mode<synchronous>, transform_indices = @transform_7, window_bounds = array<i64: 128, 640>}, {pipeline_mode = #tpu.pipeline_mode<synchronous>, transform_indices = @transform_8, window_bounds = array<i64: 1, 640>}, {transform_indices = @transform_9, window_bounds = array<i64: 8, 128>}, {transform_indices = @transform_10, window_bounds = array<i64: 8, 640>}]} {
    %c0 = arith.constant 0 : index
    %c0_0 = arith.constant 0 : index
    %0 = vector.load %arg1[%c0, %c0_0] : memref<8x64xf32, #tpu.memory_space<vmem>>, vector<8x64xf32>
    %c0_1 = arith.constant 0 : index
    %c0_2 = arith.constant 0 : index
    %1 = vector.load %arg2[%c0_1, %c0_2] : memref<64x128xf32, #tpu.memory_space<vmem>>, vector<64x128xf32>
    %cst = arith.constant dense<0.000000e+00> : vector<8x128xf32>
    %2 = tpu.matmul %0, %1, %cst {dimension_numbers = #tpu.dot_dimension_numbers<[1], [0], [0], [1], [0, 0, 1, 1], [], []>} : vector<8x64xf32>, vector<64x128xf32>, vector<8x128xf32> -> vector<8x128xf32>
    %c0_3 = arith.constant 0 : index
    %c0_4 = arith.constant 0 : index
    %3 = vector.load %arg3[%c0_3, %c0_4] : memref<1x128xf32, #tpu.memory_space<vmem>>, vector<1x128xf32>
    %4 = vector.broadcast %3 : vector<1x128xf32> to vector<8x128xf32>
    %5 = arith.addf %2, %4 : vector<8x128xf32>
    %cst_5 = arith.constant 0.000000e+00 : f32
    %6 = vector.broadcast %cst_5 : f32 to vector<8x128xf32>
    %7 = arith.maximumf %5, %6 : vector<8x128xf32>
    %c0_6 = arith.constant 0 : index
    %c0_7 = arith.constant 0 : index
    %8 = vector.load %arg4[%c0_6, %c0_7] : memref<128x128xf32, #tpu.memory_space<vmem>>, vector<128x128xf32>
    %cst_8 = arith.constant dense<0.000000e+00> : vector<8x128xf32>
    %9 = tpu.matmul %7, %8, %cst_8 {dimension_numbers = #tpu.dot_dimension_numbers<[1], [0], [0], [1], [0, 0, 1, 1], [], []>} : vector<8x128xf32>, vector<128x128xf32>, vector<8x128xf32> -> vector<8x128xf32>
    %c0_9 = arith.constant 0 : index
    %c0_10 = arith.constant 0 : index
    %10 = vector.load %arg5[%c0_9, %c0_10] : memref<1x128xf32, #tpu.memory_space<vmem>>, vector<1x128xf32>
    %11 = vector.broadcast %10 : vector<1x128xf32> to vector<8x128xf32>
    %12 = arith.addf %9, %11 : vector<8x128xf32>
    %cst_11 = arith.constant 0.000000e+00 : f32
    %13 = vector.broadcast %cst_11 : f32 to vector<8x128xf32>
    %14 = arith.maximumf %12, %13 : vector<8x128xf32>
    %c0_12 = arith.constant 0 : index
    %c0_13 = arith.constant 0 : index
    %15 = vector.load %arg10[%c0_12, %c0_13] : memref<8x128xf32, #tpu.memory_space<vmem>>, vector<8x128xf32>
    tpu.vector_store %arg10[%c0_12, %c0_13], %14 {strides = array<i32>} : memref<8x128xf32, #tpu.memory_space<vmem>>, vector<8x128xf32>,
    %c0_14 = arith.constant 0 : index
    %c0_15 = arith.constant 0 : index
    %16 = vector.load %arg6[%c0_14, %c0_15] : memref<128x128xf32, #tpu.memory_space<vmem>>, vector<128x128xf32>
    %cst_16 = arith.constant dense<0.000000e+00> : vector<8x128xf32>
    %17 = tpu.matmul %14, %16, %cst_16 {dimension_numbers = #tpu.dot_dimension_numbers<[1], [0], [0], [1], [0, 0, 1, 1], [], []>} : vector<8x128xf32>, vector<128x128xf32>, vector<8x128xf32> -> vector<8x128xf32>
    %c0_17 = arith.constant 0 : index
    %c0_18 = arith.constant 0 : index
    %18 = vector.load %arg7[%c0_17, %c0_18] : memref<1x128xf32, #tpu.memory_space<vmem>>, vector<1x128xf32>
    %19 = vector.broadcast %18 : vector<1x128xf32> to vector<8x128xf32>
    %20 = arith.addf %17, %19 : vector<8x128xf32>
    %cst_19 = arith.constant 0.000000e+00 : f32
    %21 = vector.broadcast %cst_19 : f32 to vector<8x128xf32>
    %22 = arith.maximumf %20, %21 : vector<8x128xf32>
    %c0_20 = arith.constant 0 : index
    %c0_21 = arith.constant 0 : index
    %23 = vector.load %arg8[%c0_20, %c0_21] : memref<128x640xf32, #tpu.memory_space<vmem>>, vector<128x640xf32>
    %cst_22 = arith.constant dense<0.000000e+00> : vector<8x640xf32>
    %24 = tpu.matmul %22, %23, %cst_22 {dimension_numbers = #tpu.dot_dimension_numbers<[1], [0], [0], [1], [0, 0, 1, 1], [], []>} : vector<8x128xf32>, vector<128x640xf32>, vector<8x640xf32> -> vector<8x640xf32>
    %c0_23 = arith.constant 0 : index
    %c0_24 = arith.constant 0 : index
    %25 = vector.load %arg9[%c0_23, %c0_24] : memref<1x640xf32, #tpu.memory_space<vmem>>, vector<1x640xf32>
    %26 = vector.broadcast %25 : vector<1x640xf32> to vector<8x640xf32>
    %27 = arith.addf %24, %26 : vector<8x640xf32>
    %c0_25 = arith.constant 0 : index
    %c0_26 = arith.constant 0 : index
    %28 = vector.load %arg11[%c0_25, %c0_26] : memref<8x640xf32, #tpu.memory_space<vmem>>, vector<8x640xf32>
    tpu.vector_store %arg11[%c0_25, %c0_26], %27 {strides = array<i32>} : memref<8x640xf32, #tpu.memory_space<vmem>>, vector<8x640xf32>,
    return
  }
  func.func @transform_0(%arg0: i32) -> (i32, i32) {
    %c0_i32 = arith.constant 0 : i32
    %c0_i32_0 = arith.constant 0 : i32
    return %arg0, %c0_i32 : i32, i32
  }
  func.func @transform_1(%arg0: i32) -> (i32, i32) {
    %c0_i32 = arith.constant 0 : i32
    %c0_i32_0 = arith.constant 0 : i32
    %c0_i32_1 = arith.constant 0 : i32
    return %c0_i32, %c0_i32_0 : i32, i32
  }
  func.func @transform_2(%arg0: i32) -> (i32, i32) {
    %c0_i32 = arith.constant 0 : i32
    %c0_i32_0 = arith.constant 0 : i32
    %c0_i32_1 = arith.constant 0 : i32
    return %c0_i32, %c0_i32_0 : i32, i32
  }
  func.func @transform_3(%arg0: i32) -> (i32, i32) {
    %c0_i32 = arith.constant 0 : i32
    %c0_i32_0 = arith.constant 0 : i32
    %c0_i32_1 = arith.constant 0 : i32
    return %c0_i32, %c0_i32_0 : i32, i32
  }
  func.func @transform_4(%arg0: i32) -> (i32, i32) {
    %c0_i32 = arith.constant 0 : i32
    %c0_i32_0 = arith.constant 0 : i32
    %c0_i32_1 = arith.constant 0 : i32
    return %c0_i32, %c0_i32_0 : i32, i32
  }
  func.func @transform_5(%arg0: i32) -> (i32, i32) {
    %c0_i32 = arith.constant 0 : i32
    %c0_i32_0 = arith.constant 0 : i32
    %c0_i32_1 = arith.constant 0 : i32
    return %c0_i32, %c0_i32_0 : i32, i32
  }
  func.func @transform_6(%arg0: i32) -> (i32, i32) {
    %c0_i32 = arith.constant 0 : i32
    %c0_i32_0 = arith.constant 0 : i32
    %c0_i32_1 = arith.constant 0 : i32
    return %c0_i32, %c0_i32_0 : i32, i32
  }
  func.func @transform_7(%arg0: i32) -> (i32, i32) {
    %c0_i32 = arith.constant 0 : i32
    %c0_i32_0 = arith.constant 0 : i32
    %c0_i32_1 = arith.constant 0 : i32
    return %c0_i32, %c0_i32_0 : i32, i32
  }
  func.func @transform_8(%arg0: i32) -> (i32, i32) {
    %c0_i32 = arith.constant 0 : i32
    %c0_i32_0 = arith.constant 0 : i32
    %c0_i32_1 = arith.constant 0 : i32
    return %c0_i32, %c0_i32_0 : i32, i32
  }
  func.func @transform_9(%arg0: i32) -> (i32, i32) {
    %c0_i32 = arith.constant 0 : i32
    %c0_i32_0 = arith.constant 0 : i32
    return %arg0, %c0_i32 : i32, i32
  }
  func.func @transform_10(%arg0: i32) -> (i32, i32) {
    %c0_i32 = arith.constant 0 : i32
    %c0_i32_0 = arith.constant 0 : i32
    return %arg0, %c0_i32 : i32, i32
  }
}

</mosaic_0001>

<llo_original>
// kernel: dynamics_network_forward.1
$region0: #{dynamics_network_forward.1}
  #allocation0 [shape = 'u32[]', space=smem, size = 0x4, offset = 0x4, fixed_abs, tag = 'smem constant byte address 0x4 - core index']
  #allocation1 [shape = 'u32[144,128]{1,0:T(1,128)}', space=vmem, size = 0x12000, scoped, tag = 'internal scratch']
  %s0 = inlined_call_operand.hbm [shape: f32[8,64], index: 0, kind: input, shape index: {}]
  %s1 = inlined_call_operand.hbm [shape: f32[64,128], index: 1, kind: input, shape index: {}]
  %s2 = inlined_call_operand.vmem [shape: f32[1,128], index: 2, kind: input, shape index: {}]
  %s3 = inlined_call_operand.hbm [shape: f32[128,128], index: 3, kind: input, shape index: {}]
  %s4 = inlined_call_operand.vmem [shape: f32[1,128], index: 4, kind: input, shape index: {}]
  %s5 = inlined_call_operand.hbm [shape: f32[128,128], index: 5, kind: input, shape index: {}]
  %s6 = inlined_call_operand.vmem [shape: f32[1,128], index: 6, kind: input, shape index: {}]
  %s7 = inlined_call_operand.hbm [shape: f32[128,640], index: 7, kind: input, shape index: {}]
  %s8 = inlined_call_operand.vmem [shape: f32[1,640], index: 8, kind: input, shape index: {}]
  %s9 = inlined_call_operand.hbm [shape: f32[8,128], index: 9, kind: output, shape index: {0}]
  %s10 = inlined_call_operand.hbm [shape: f32[8,640], index: 10, kind: output, shape index: {1}]
  %11 = xla_tuple %s9, %s10
  %s12 = sld [smem:[#allocation0]]
  $region74: #{dynamics_network_forward.1} parent=0
    _
  %s14 = ssub.s32 1, %s12
  %s15 = scalar_select 0, %s14, %s12
  $region1: #{dynamics_network_forward.1} parent=0
    #allocation2 [shape = 'u8[4096]{0}', space=vmem, size = 0x1000, scoped, tag = 'input window, operand 0, single buffered']
    #allocation3 [shape = 's32[1]{0}', space=sflag, size = 0x4, scoped, tag = 'scoped memory for dynamics_network_forward.1']
    #allocation4 [shape = 's32[1]{0}', space=sflag, size = 0x4, scoped, tag = 'scoped memory for dynamics_network_forward.1']
    #allocation5 [shape = 'u8[32768]{0}', space=vmem, size = 0x8000, scoped, tag = 'input window, operand 1, single buffered']
    #allocation6 [shape = 's32[1]{0}', space=sflag, size = 0x4, scoped, tag = 'scoped memory for dynamics_network_forward.1']
    #allocation7 [shape = 'u8[65536]{0}', space=vmem, size = 0x10000, scoped, tag = 'input window, operand 3, single buffered']
    #allocation8 [shape = 'u8[65536]{0}', space=vmem, size = 0x10000, scoped, tag = 'input window, operand 5, single buffered']
    #allocation9 [shape = 's32[1]{0}', space=sflag, size = 0x4, scoped, tag = 'scoped memory for dynamics_network_forward.1']
    #allocation10 [shape = 'u8[327680]{0}', space=vmem, size = 0x50000, scoped, tag = 'input window, operand 7, single buffered']
    #allocation11 [shape = 'u8[4096]{0}', space=vmem, size = 0x1000, scoped, tag = 'output window, operand 0, single buffered']
    #allocation12 [shape = 'u8[20480]{0}', space=vmem, size = 0x5000, scoped, tag = 'output window, operand 1, single buffered']
    #allocation13 [shape = 's32[1]{0}', space=sflag, size = 0x4, scoped, tag = 'scoped memory for dynamics_network_forward.1']
    %16 = vsyncpa [#allocation3], 0
    %17 = vsyncpa [#allocation6], 0
    %18 = vsyncpa [#allocation9], 0
    %19 = vsyncpa [#allocation4], 0
    %20 = vsyncpa [#allocation13], 0
    // Predicated region
    $region2: #{dynamics_network_forward.1} parent=1 // pred_check
      _
    $region3: #{dynamics_network_forward.1} parent=1 // pred_check_branch
      %22 = sbr.rel (0) target = $region5
    $region4: #{dynamics_network_forward.1} parent=1 // pred_region
      %s24 = ssub.s32 128, 128
      %25 = vsyncadd [#allocation3], %s24
      %s27 = sshll.u32 [#allocation2], 4
      %s28 = int_to_ptr.vmem [resolvable:$true] %s27
      %30 = dma.hbm_to_vmem [thread:$0]  %s0, 128, %s28, [#allocation3]
    $region5: #{dynamics_network_forward.1} parent=1 // pred_fallthru
      _
    // Predicated region
    $region6: #{dynamics_network_forward.1} parent=1 // pred_check
      _
    $region7: #{dynamics_network_forward.1} parent=1 // pred_check_branch
      %32 = sbr.rel (0) target = $region9
    $region8: #{dynamics_network_forward.1} parent=1 // pred_region
      %s34 = ssub.s32 1024, 1024
      %35 = vsyncadd [#allocation6], %s34
      %s36 = sshll.u32 [#allocation5], 4
      %s37 = int_to_ptr.vmem [resolvable:$true] %s36
      %42 = dma.hbm_to_vmem [thread:$0]  %s1, 1024, %s37, [#allocation6], 128, 128, 8
    $region9: #{dynamics_network_forward.1} parent=1 // pred_fallthru
      _
    // Predicated region
    $region10: #{dynamics_network_forward.1} parent=1 // pred_check
      _
    $region11: #{dynamics_network_forward.1} parent=1 // pred_check_branch
      %44 = sbr.rel (0) target = $region13
    $region12: #{dynamics_network_forward.1} parent=1 // pred_region
      _
    $region13: #{dynamics_network_forward.1} parent=1 // pred_fallthru
      _
    // Predicated region
    $region14: #{dynamics_network_forward.1} parent=1 // pred_check
      _
    $region15: #{dynamics_network_forward.1} parent=1 // pred_check_branch
      %46 = sbr.rel (0) target = $region17
    $region16: #{dynamics_network_forward.1} parent=1 // pred_region
      %s48 = ssub.s32 2048, 2048
      %49 = vsyncadd [#allocation6], %s48
      %s50 = sshll.u32 [#allocation7], 4
      %s51 = int_to_ptr.vmem [resolvable:$true] %s50
      %56 = dma.hbm_to_vmem [thread:$0]  %s3, 2048, %s51, [#allocation6], 128, 128, 8
    $region17: #{dynamics_network_forward.1} parent=1 // pred_fallthru
      _
    // Predicated region
    $region18: #{dynamics_network_forward.1} parent=1 // pred_check
      _
    $region19: #{dynamics_network_forward.1} parent=1 // pred_check_branch
      %58 = sbr.rel (0) target = $region21
    $region20: #{dynamics_network_forward.1} parent=1 // pred_region
      _
    $region21: #{dynamics_network_forward.1} parent=1 // pred_fallthru
      _
    // Predicated region
    $region22: #{dynamics_network_forward.1} parent=1 // pred_check
      _
    $region23: #{dynamics_network_forward.1} parent=1 // pred_check_branch
      %60 = sbr.rel (0) target = $region25
    $region24: #{dynamics_network_forward.1} parent=1 // pred_region
      %s62 = ssub.s32 2048, 2048
      %63 = vsyncadd [#allocation9], %s62
      %s64 = sshll.u32 [#allocation8], 4
      %s65 = int_to_ptr.vmem [resolvable:$true] %s64
      %70 = dma.hbm_to_vmem [thread:$0]  %s5, 2048, %s65, [#allocation9], 128, 128, 8
    $region25: #{dynamics_network_forward.1} parent=1 // pred_fallthru
      _
    // Predicated region
    $region26: #{dynamics_network_forward.1} parent=1 // pred_check
      _
    $region27: #{dynamics_network_forward.1} parent=1 // pred_check_branch
      %72 = sbr.rel (0) target = $region29
    $region28: #{dynamics_network_forward.1} parent=1 // pred_region
      _
    $region29: #{dynamics_network_forward.1} parent=1 // pred_fallthru
      _
    // Predicated region
    $region30: #{dynamics_network_forward.1} parent=1 // pred_check
      _
    $region31: #{dynamics_network_forward.1} parent=1 // pred_check_branch
      %74 = sbr.rel (0) target = $region33
    $region32: #{dynamics_network_forward.1} parent=1 // pred_region
      %s76 = ssub.s32 10240, 10240
      %77 = vsyncadd [#allocation9], %s76
      %s78 = sshll.u32 [#allocation10], 4
      %s79 = int_to_ptr.vmem [resolvable:$true] %s78
      %84 = dma.hbm_to_vmem [thread:$0]  %s7, 10240, %s79, [#allocation9], 640, 640, 40
    $region33: #{dynamics_network_forward.1} parent=1 // pred_fallthru
      _
    // Predicated region
    $region34: #{dynamics_network_forward.1} parent=1 // pred_check
      _
    $region35: #{dynamics_network_forward.1} parent=1 // pred_check_branch
      %86 = sbr.rel (0) target = $region37
    $region36: #{dynamics_network_forward.1} parent=1 // pred_region
      _
    $region37: #{dynamics_network_forward.1} parent=1 // pred_fallthru
      _
    // Predicated region
    $region38: #{dynamics_network_forward.1} parent=1 // pred_check
      _
    $region39: #{dynamics_network_forward.1} parent=1 // pred_check_branch
      %88 = sbr.rel (0) target = $region41
    $region40: #{dynamics_network_forward.1} parent=1 // pred_region
      %89 = dma.done [#allocation3], 128
    $region41: #{dynamics_network_forward.1} parent=1 // pred_fallthru
      _
    // Predicated region
    $region42: #{dynamics_network_forward.1} parent=1 // pred_check
      _
    $region43: #{dynamics_network_forward.1} parent=1 // pred_check_branch
      %91 = sbr.rel (0) target = $region45
    $region44: #{dynamics_network_forward.1} parent=1 // pred_region
      %92 = dma.done [#allocation6], 1024
    $region45: #{dynamics_network_forward.1} parent=1 // pred_fallthru
      _
    // Predicated region
    $region46: #{dynamics_network_forward.1} parent=1 // pred_check
      _
    $region47: #{dynamics_network_forward.1} parent=1 // pred_check_branch
      %94 = sbr.rel (0) target = $region49
    $region48: #{dynamics_network_forward.1} parent=1 // pred_region
      %95 = dma.done [#allocation6], 2048
    $region49: #{dynamics_network_forward.1} parent=1 // pred_fallthru
      _
    // Predicated region
    $region50: #{dynamics_network_forward.1} parent=1 // pred_check
      _
    $region51: #{dynamics_network_forward.1} parent=1 // pred_check_branch
      %97 = sbr.rel (0) target = $region53
    $region52: #{dynamics_network_forward.1} parent=1 // pred_region
      %98 = dma.done [#allocation9], 2048
    $region53: #{dynamics_network_forward.1} parent=1 // pred_fallthru
      _
    // Predicated region
    $region54: #{dynamics_network_forward.1} parent=1 // pred_check
      _
    $region55: #{dynamics_network_forward.1} parent=1 // pred_check_branch
      %100 = sbr.rel (0) target = $region57
    $region56: #{dynamics_network_forward.1} parent=1 // pred_region
      %101 = dma.done [#allocation9], 10240
    $region57: #{dynamics_network_forward.1} parent=1 // pred_fallthru
      _
    %v102 = vld [vmem:[#allocation2] sm:$0xff]
    %v103 = vld [vmem:[#allocation5] sm:$0xff]
    %v104 = vld [vmem:[#allocation5 + $0x8] sm:$0xff]
    %v105 = vld [vmem:[#allocation5 + $0x10] sm:$0xff]
    %v106 = vld [vmem:[#allocation5 + $0x18] sm:$0xff]
    %v107 = vld [vmem:[#allocation5 + $0x20] sm:$0xff]
    %v108 = vld [vmem:[#allocation5 + $0x28] sm:$0xff]
    %v109 = vld [vmem:[#allocation5 + $0x30] sm:$0xff]
    %v110 = vld [vmem:[#allocation5 + $0x38] sm:$0xff]
    %v111 = vld [vmem:[%s2] sm:$0x1]
    %v113 = vlaneseq
    %v114 = vshrl.u32 %v113, 7
    %v115 = vsub.s32 0, %v114
    %v116 = vrot.slane %v111, %v115
    %vm118 = vcmask 523264
    %v120 = vsel %vm118, %v102, 0
    %122 = vmatprep.subr.mxu0 0.0
    %123 = vmatpush1.msra.mxu0 %v103
    %124 = vmatprep.subr.mxu0 0.0
    %125 = vmatpush1.msra.mxu0 %v104
    %126 = vmatprep.subr.mxu0 0.0
    %127 = vmatpush1.msra.mxu0 %v105
    %128 = vmatprep.subr.mxu0 0.0
    %129 = vmatpush1.msra.mxu0 %v106
    %130 = vmatprep.subr.mxu0 0.0
    %131 = vmatpush1.msra.mxu0 %v107
    %132 = vmatprep.subr.mxu0 0.0
    %133 = vmatpush1.msra.mxu0 %v108
    %134 = vmatprep.subr.mxu0 0.0
    %135 = vmatpush1.msra.mxu0 %v109
    %136 = vmatprep.subr.mxu0 0.0
    %137 = vmatpush1.msra.mxu0 %v110
    %138 = vmatprep.subr.mxu0 0.0
    %139 = vmatpush1.msra.mxu0 0.0
    %140 = vmatprep.subr.mxu0 0.0
    %141 = vmatpush1.msra.mxu0 0.0
    %142 = vmatprep.subr.mxu0 0.0
    %143 = vmatpush1.msra.mxu0 0.0
    %144 = vmatprep.subr.mxu0 0.0
    %145 = vmatpush1.msra.mxu0 0.0
    %146 = vmatprep.subr.mxu0 0.0
    %147 = vmatpush1.msra.mxu0 0.0
    %148 = vmatprep.subr.mxu0 0.0
    %149 = vmatpush1.msra.mxu0 0.0
    %150 = vmatprep.subr.mxu0 0.0
    %151 = vmatpush1.msra.mxu0 0.0
    %152 = vmatprep.subr.mxu0 0.0
    %153 = vmatpush1.msra.mxu0 0.0
    %154 = vmatprep.subr.mxu0 0.0
    %155 = vmatpush1.msra.mxu0 0.0
    %156 = vmatprep.subr.mxu0 0.0
    %157 = vmatpush1.msra.mxu0 0.0
    %158 = vmatprep.subr.mxu0 0.0
    %159 = vmatpush1.msra.mxu0 0.0
    %160 = vmatprep.subr.mxu0 0.0
    %161 = vmatpush1.msra.mxu0 0.0
    %162 = vmatprep.subr.mxu0 0.0
    %163 = vmatpush1.msra.mxu0 0.0
    %164 = vmatprep.subr.mxu0 0.0
    %165 = vmatpush1.msra.mxu0 0.0
    %166 = vmatprep.subr.mxu0 0.0
    %167 = vmatpush1.msra.mxu0 0.0
    %168 = vmatprep.subr.mxu0 0.0
    %169 = vmatpush1.msra.mxu0 0.0
    %170 = vmatprep.subr.mxu0 0.0
    %171 = vmatpush1.msra.mxu0 0.0
    %172 = vmatprep.subr.mxu0 0.0
    %173 = vmatpush1.msra.mxu0 0.0
    %174 = vmatprep.subr.mxu0 0.0
    %175 = vmatpush1.msra.mxu0 0.0
    %176 = vmatprep.subr.mxu0 0.0
    %177 = vmatpush1.msra.mxu0 0.0
    %178 = vmatprep.subr.mxu0 0.0
    %179 = vmatpush1.msra.mxu0 0.0
    %180 = vmatprep.subr.mxu0 0.0
    %181 = vmatpush1.msra.mxu0 0.0
    %182 = vmatprep.subr.mxu0 0.0
    %183 = vmatpush1.msra.mxu0 0.0
    %184 = vmatprep.subr.mxu0 0.0
    %185 = vmatpush1.msra.mxu0 0.0
    %186 = vmatprep.mubr.f32.mxu0 0.0
    %187 = vmatmul.mubr.f32.gmra.mrb[0].mxu0 %v120
    %v188 = vpop.f32.mrb[0].mxu0
    %v189 = vadd.f32 %v116, %v188
    %v190 = vpop.f32.mrb[0].mxu0
    %191 = vdwg.mxu0
    %v192 = vmax.f32 %v189, 0.0
    %v193 = vld [vmem:[#allocation7] sm:$0xff]
    %v194 = vld [vmem:[#allocation7 + $0x8] sm:$0xff]
    %v195 = vld [vmem:[#allocation7 + $0x10] sm:$0xff]
    %v196 = vld [vmem:[#allocation7 + $0x18] sm:$0xff]
    %v197 = vld [vmem:[#allocation7 + $0x20] sm:$0xff]
    %v198 = vld [vmem:[#allocation7 + $0x28] sm:$0xff]
    %v199 = vld [vmem:[#allocation7 + $0x30] sm:$0xff]
    %v200 = vld [vmem:[#allocation7 + $0x38] sm:$0xff]
    %v201 = vld [vmem:[#allocation7 + $0x40] sm:$0xff]
    %v202 = vld [vmem:[#allocation7 + $0x48] sm:$0xff]
    %v203 = vld [vmem:[#allocation7 + $0x50] sm:$0xff]
    %v204 = vld [vmem:[#allocation7 + $0x58] sm:$0xff]
    %v205 = vld [vmem:[#allocation7 + $0x60] sm:$0xff]
    %v206 = vld [vmem:[#allocation7 + $0x68] sm:$0xff]
    %v207 = vld [vmem:[#allocation7 + $0x70] sm:$0xff]
    %v208 = vld [vmem:[#allocation7 + $0x78] sm:$0xff]
    %v209 = vld [vmem:[%s4] sm:$0x1]
    %v211 = vlaneseq
    %v212 = vshrl.u32 %v211, 7
    %v213 = vsub.s32 0, %v212
    %v214 = vrot.slane %v209, %v213
    %216 = vmatprep.subr.mxu0 0.0
    %217 = vmatpush1.msra.mxu0 %v193
    %218 = vmatprep.subr.mxu0 0.0
    %219 = vmatpush1.msra.mxu0 %v194
    %220 = vmatprep.subr.mxu0 0.0
    %221 = vmatpush1.msra.mxu0 %v195
    %222 = vmatprep.subr.mxu0 0.0
    %223 = vmatpush1.msra.mxu0 %v196
    %224 = vmatprep.subr.mxu0 0.0
    %225 = vmatpush1.msra.mxu0 %v197
    %226 = vmatprep.subr.mxu0 0.0
    %227 = vmatpush1.msra.mxu0 %v198
    %228 = vmatprep.subr.mxu0 0.0
    %229 = vmatpush1.msra.mxu0 %v199
    %230 = vmatprep.subr.mxu0 0.0
    %231 = vmatpush1.msra.mxu0 %v200
    %232 = vmatprep.subr.mxu0 0.0
    %233 = vmatpush1.msra.mxu0 %v201
    %234 = vmatprep.subr.mxu0 0.0
    %235 = vmatpush1.msra.mxu0 %v202
    %236 = vmatprep.subr.mxu0 0.0
    %237 = vmatpush1.msra.mxu0 %v203
    %238 = vmatprep.subr.mxu0 0.0
    %239 = vmatpush1.msra.mxu0 %v204
    %240 = vmatprep.subr.mxu0 0.0
    %241 = vmatpush1.msra.mxu0 %v205
    %242 = vmatprep.subr.mxu0 0.0
    %243 = vmatpush1.msra.mxu0 %v206
    %244 = vmatprep.subr.mxu0 0.0
    %245 = vmatpush1.msra.mxu0 %v207
    %246 = vmatprep.subr.mxu0 0.0
    %247 = vmatpush1.msra.mxu0 %v208
    %248 = vmatprep.subr.mxu0 0.0
    %249 = vmatpush1.msra.mxu0 0.0
    %250 = vmatprep.subr.mxu0 0.0
    %251 = vmatpush1.msra.mxu0 0.0
    %252 = vmatprep.subr.mxu0 0.0
    %253 = vmatpush1.msra.mxu0 0.0
    %254 = vmatprep.subr.mxu0 0.0
    %255 = vmatpush1.msra.mxu0 0.0
    %256 = vmatprep.subr.mxu0 0.0
    %257 = vmatpush1.msra.mxu0 0.0
    %258 = vmatprep.subr.mxu0 0.0
    %259 = vmatpush1.msra.mxu0 0.0
    %260 = vmatprep.subr.mxu0 0.0
    %261 = vmatpush1.msra.mxu0 0.0
    %262 = vmatprep.subr.mxu0 0.0
    %263 = vmatpush1.msra.mxu0 0.0
    %264 = vmatprep.subr.mxu0 0.0
    %265 = vmatpush1.msra.mxu0 0.0
    %266 = vmatprep.subr.mxu0 0.0
    %267 = vmatpush1.msra.mxu0 0.0
    %268 = vmatprep.subr.mxu0 0.0
    %269 = vmatpush1.msra.mxu0 0.0
    %270 = vmatprep.subr.mxu0 0.0
    %271 = vmatpush1.msra.mxu0 0.0
    %272 = vmatprep.subr.mxu0 0.0
    %273 = vmatpush1.msra.mxu0 0.0
    %274 = vmatprep.subr.mxu0 0.0
    %275 = vmatpush1.msra.mxu0 0.0
    %276 = vmatprep.subr.mxu0 0.0
    %277 = vmatpush1.msra.mxu0 0.0
    %278 = vmatprep.subr.mxu0 0.0
    %279 = vmatpush1.msra.mxu0 0.0
    %280 = vmatprep.mubr.f32.mxu0 0.0
    %281 = vmatmul.mubr.f32.gmra.mrb[0].mxu0 %v192
    %v282 = vpop.f32.mrb[0].mxu0
    %v283 = vadd.f32 %v214, %v282
    %v284 = vpop.f32.mrb[0].mxu0
    %285 = vdwg.mxu0
    %v286 = vmax.f32 %v283, 0.0
    %287 = vst [vmem:[#allocation11] sm:$0xff] %v286
    %v288 = vld [vmem:[#allocation8] sm:$0xff]
    %v289 = vld [vmem:[#allocation8 + $0x8] sm:$0xff]
    %v290 = vld [vmem:[#allocation8 + $0x10] sm:$0xff]
    %v291 = vld [vmem:[#allocation8 + $0x18] sm:$0xff]
    %v292 = vld [vmem:[#allocation8 + $0x20] sm:$0xff]
    %v293 = vld [vmem:[#allocation8 + $0x28] sm:$0xff]
    %v294 = vld [vmem:[#allocation8 + $0x30] sm:$0xff]
    %v295 = vld [vmem:[#allocation8 + $0x38] sm:$0xff]
    %v296 = vld [vmem:[#allocation8 + $0x40] sm:$0xff]
    %v297 = vld [vmem:[#allocation8 + $0x48] sm:$0xff]
    %v298 = vld [vmem:[#allocation8 + $0x50] sm:$0xff]
    %v299 = vld [vmem:[#allocation8 + $0x58] sm:$0xff]
    %v300 = vld [vmem:[#allocation8 + $0x60] sm:$0xff]
    %v301 = vld [vmem:[#allocation8 + $0x68] sm:$0xff]
    %v302 = vld [vmem:[#allocation8 + $0x70] sm:$0xff]
    %v303 = vld [vmem:[#allocation8 + $0x78] sm:$0xff]
    %v304 = vld [vmem:[%s6] sm:$0x1]
    %v306 = vlaneseq
    %v307 = vshrl.u32 %v306, 7
    %v308 = vsub.s32 0, %v307
    %v309 = vrot.slane %v304, %v308
    %311 = vmatprep.subr.mxu0 0.0
    %312 = vmatpush1.msra.mxu0 %v288
    %313 = vmatprep.subr.mxu0 0.0
    %314 = vmatpush1.msra.mxu0 %v289
    %315 = vmatprep.subr.mxu0 0.0
    %316 = vmatpush1.msra.mxu0 %v290
    %317 = vmatprep.subr.mxu0 0.0
    %318 = vmatpush1.msra.mxu0 %v291
    %319 = vmatprep.subr.mxu0 0.0
    %320 = vmatpush1.msra.mxu0 %v292
    %321 = vmatprep.subr.mxu0 0.0
    %322 = vmatpush1.msra.mxu0 %v293
    %323 = vmatprep.subr.mxu0 0.0
    %324 = vmatpush1.msra.mxu0 %v294
    %325 = vmatprep.subr.mxu0 0.0
    %326 = vmatpush1.msra.mxu0 %v295
    %327 = vmatprep.subr.mxu0 0.0
    %328 = vmatpush1.msra.mxu0 %v296
    %329 = vmatprep.subr.mxu0 0.0
    %330 = vmatpush1.msra.mxu0 %v297
    %331 = vmatprep.subr.mxu0 0.0
    %332 = vmatpush1.msra.mxu0 %v298
    %333 = vmatprep.subr.mxu0 0.0
    %334 = vmatpush1.msra.mxu0 %v299
    %335 = vmatprep.subr.mxu0 0.0
    %336 = vmatpush1.msra.mxu0 %v300
    %337 = vmatprep.subr.mxu0 0.0
    %338 = vmatpush1.msra.mxu0 %v301
    %339 = vmatprep.subr.mxu0 0.0
    %340 = vmatpush1.msra.mxu0 %v302
    %341 = vmatprep.subr.mxu0 0.0
    %342 = vmatpush1.msra.mxu0 %v303
    %343 = vmatprep.subr.mxu0 0.0
    %344 = vmatpush1.msra.mxu0 0.0
    %345 = vmatprep.subr.mxu0 0.0
    %346 = vmatpush1.msra.mxu0 0.0
    %347 = vmatprep.subr.mxu0 0.0
    %348 = vmatpush1.msra.mxu0 0.0
    %349 = vmatprep.subr.mxu0 0.0
    %350 = vmatpush1.msra.mxu0 0.0
    %351 = vmatprep.subr.mxu0 0.0
    %352 = vmatpush1.msra.mxu0 0.0
    %353 = vmatprep.subr.mxu0 0.0
    %354 = vmatpush1.msra.mxu0 0.0
    %355 = vmatprep.subr.mxu0 0.0
    %356 = vmatpush1.msra.mxu0 0.0
    %357 = vmatprep.subr.mxu0 0.0
    %358 = vmatpush1.msra.mxu0 0.0
    %359 = vmatprep.subr.mxu0 0.0
    %360 = vmatpush1.msra.mxu0 0.0
    %361 = vmatprep.subr.mxu0 0.0
    %362 = vmatpush1.msra.mxu0 0.0
    %363 = vmatprep.subr.mxu0 0.0
    %364 = vmatpush1.msra.mxu0 0.0
    %365 = vmatprep.subr.mxu0 0.0
    %366 = vmatpush1.msra.mxu0 0.0
    %367 = vmatprep.subr.mxu0 0.0
    %368 = vmatpush1.msra.mxu0 0.0
    %369 = vmatprep.subr.mxu0 0.0
    %370 = vmatpush1.msra.mxu0 0.0
    %371 = vmatprep.subr.mxu0 0.0
    %372 = vmatpush1.msra.mxu0 0.0
    %373 = vmatprep.subr.mxu0 0.0
    %374 = vmatpush1.msra.mxu0 0.0
    %375 = vmatprep.mubr.f32.mxu0 0.0
    %376 = vmatmul.mubr.f32.gmra.mrb[0].mxu0 %v286
    %v377 = vpop.f32.mrb[0].mxu0
    %v378 = vadd.f32 %v309, %v377
    %v379 = vpop.f32.mrb[0].mxu0
    %380 = vdwg.mxu0
    %v381 = vmax.f32 %v378, 0.0
    %v382 = vld [vmem:[#allocation10] sm:$0xff]
    %v383 = vld [vmem:[#allocation10 + $0x8] sm:$0xff]
    %v384 = vld [vmem:[#allocation10 + $0x10] sm:$0xff]
    %v385 = vld [vmem:[#allocation10 + $0x18] sm:$0xff]
    %v386 = vld [vmem:[#allocation10 + $0x20] sm:$0xff]
    %v387 = vld [vmem:[#allocation10 + $0x28] sm:$0xff]
    %v388 = vld [vmem:[#allocation10 + $0x30] sm:$0xff]
    %v389 = vld [vmem:[#allocation10 + $0x38] sm:$0xff]
    %v390 = vld [vmem:[#allocation10 + $0x40] sm:$0xff]
    %v391 = vld [vmem:[#allocation10 + $0x48] sm:$0xff]
    %v392 = vld [vmem:[#allocation10 + $0x50] sm:$0xff]
    %v393 = vld [vmem:[#allocation10 + $0x58] sm:$0xff]
    %v394 = vld [vmem:[#allocation10 + $0x60] sm:$0xff]
    %v395 = vld [vmem:[#allocation10 + $0x68] sm:$0xff]
    %v396 = vld [vmem:[#allocation10 + $0x70] sm:$0xff]
    %v397 = vld [vmem:[#allocation10 + $0x78] sm:$0xff]
    %v398 = vld [vmem:[#allocation10 + $0x80] sm:$0xff]
    %v399 = vld [vmem:[#allocation10 + $0x88] sm:$0xff]
    %v400 = vld [vmem:[#allocation10 + $0x90] sm:$0xff]
    %v401 = vld [vmem:[#allocation10 + $0x98] sm:$0xff]
    %v402 = vld [vmem:[#allocation10 + $0xa0] sm:$0xff]
    %v403 = vld [vmem:[#allocation10 + $0xa8] sm:$0xff]
    %v404 = vld [vmem:[#allocation10 + $0xb0] sm:$0xff]
    %v405 = vld [vmem:[#allocation10 + $0xb8] sm:$0xff]
    %v406 = vld [vmem:[#allocation10 + $0xc0] sm:$0xff]
    %v407 = vld [vmem:[#allocation10 + $0xc8] sm:$0xff]
    %v408 = vld [vmem:[#allocation10 + $0xd0] sm:$0xff]
    %v409 = vld [vmem:[#allocation10 + $0xd8] sm:$0xff]
    %v410 = vld [vmem:[#allocation10 + $0xe0] sm:$0xff]
    %v411 = vld [vmem:[#allocation10 + $0xe8] sm:$0xff]
    %v412 = vld [vmem:[#allocation10 + $0xf0] sm:$0xff]
    %v413 = vld [vmem:[#allocation10 + $0xf8] sm:$0xff]
    %v414 = vld [vmem:[#allocation10 + $0x100] sm:$0xff]
    %v415 = vld [vmem:[#allocation10 + $0x108] sm:$0xff]
    %v416 = vld [vmem:[#allocation10 + $0x110] sm:$0xff]
    %v417 = vld [vmem:[#allocation10 + $0x118] sm:$0xff]
    %v418 = vld [vmem:[#allocation10 + $0x120] sm:$0xff]
    %v419 = vld [vmem:[#allocation10 + $0x128] sm:$0xff]
    %v420 = vld [vmem:[#allocation10 + $0x130] sm:$0xff]
    %v421 = vld [vmem:[#allocation10 + $0x138] sm:$0xff]
    %v422 = vld [vmem:[#allocation10 + $0x140] sm:$0xff]
    %v423 = vld [vmem:[#allocation10 + $0x148] sm:$0xff]
    %v424 = vld [vmem:[#allocation10 + $0x150] sm:$0xff]
    %v425 = vld [vmem:[#allocation10 + $0x158] sm:$0xff]
    %v426 = vld [vmem:[#allocation10 + $0x160] sm:$0xff]
    %v427 = vld [vmem:[#allocation10 + $0x168] sm:$0xff]
    %v428 = vld [vmem:[#allocation10 + $0x170] sm:$0xff]
    %v429 = vld [vmem:[#allocation10 + $0x178] sm:$0xff]
    %v430 = vld [vmem:[#allocation10 + $0x180] sm:$0xff]
    %v431 = vld [vmem:[#allocation10 + $0x188] sm:$0xff]
    %v432 = vld [vmem:[#allocation10 + $0x190] sm:$0xff]
    %v433 = vld [vmem:[#allocation10 + $0x198] sm:$0xff]
    %v434 = vld [vmem:[#allocation10 + $0x1a0] sm:$0xff]
    %v435 = vld [vmem:[#allocation10 + $0x1a8] sm:$0xff]
    %v436 = vld [vmem:[#allocation10 + $0x1b0] sm:$0xff]
    %v437 = vld [vmem:[#allocation10 + $0x1b8] sm:$0xff]
    %v438 = vld [vmem:[#allocation10 + $0x1c0] sm:$0xff]
    %v439 = vld [vmem:[#allocation10 + $0x1c8] sm:$0xff]
    %v440 = vld [vmem:[#allocation10 + $0x1d0] sm:$0xff]
    %v441 = vld [vmem:[#allocation10 + $0x1d8] sm:$0xff]
    %v442 = vld [vmem:[#allocation10 + $0x1e0] sm:$0xff]
    %v443 = vld [vmem:[#allocation10 + $0x1e8] sm:$0xff]
    %v444 = vld [vmem:[#allocation10 + $0x1f0] sm:$0xff]
    %v445 = vld [vmem:[#allocation10 + $0x1f8] sm:$0xff]
    %v446 = vld [vmem:[#allocation10 + $0x200] sm:$0xff]
    %v447 = vld [vmem:[#allocation10 + $0x208] sm:$0xff]
    %v448 = vld [vmem:[#allocation10 + $0x210] sm:$0xff]
    %v449 = vld [vmem:[#allocation10 + $0x218] sm:$0xff]
    %v450 = vld [vmem:[#allocation10 + $0x220] sm:$0xff]
    %v451 = vld [vmem:[#allocation10 + $0x228] sm:$0xff]
    %v452 = vld [vmem:[#allocation10 + $0x230] sm:$0xff]
    %v453 = vld [vmem:[#allocation10 + $0x238] sm:$0xff]
    %v454 = vld [vmem:[#allocation10 + $0x240] sm:$0xff]
    %v455 = vld [vmem:[#allocation10 + $0x248] sm:$0xff]
    %v456 = vld [vmem:[#allocation10 + $0x250] sm:$0xff]
    %v457 = vld [vmem:[#allocation10 + $0x258] sm:$0xff]
    %v458 = vld [vmem:[#allocation10 + $0x260] sm:$0xff]
    %v459 = vld [vmem:[#allocation10 + $0x268] sm:$0xff]
    %v460 = vld [vmem:[#allocation10 + $0x270] sm:$0xff]
    %v461 = vld [vmem:[#allocation10 + $0x278] sm:$0xff]
    %v462 = vld [vmem:[%s8] sm:$0x1f]
    %v464 = vlaneseq
    %v465 = vshrl.u32 %v464, 7
    %v466 = vsub.s32 0, %v465
    %v467 = vrot.slane %v462, %v466
    %v468 = vlaneseq
    %v469 = vshrl.u32 %v468, 7
    %v470 = vsub.s32 1, %v469
    %v471 = vrot.slane %v462, %v470
    %v472 = vlaneseq
    %v473 = vshrl.u32 %v472, 7
    %v474 = vsub.s32 2, %v473
    %v475 = vrot.slane %v462, %v474
    %v476 = vlaneseq
    %v477 = vshrl.u32 %v476, 7
    %v478 = vsub.s32 3, %v477
    %v479 = vrot.slane %v462, %v478
    %v480 = vlaneseq
    %v481 = vshrl.u32 %v480, 7
    %v482 = vsub.s32 4, %v481
    %v483 = vrot.slane %v462, %v482
    %489 = vmatprep.subr.mxu0 %v383
    %490 = vmatpush1.msra.mxu0 %v382
    %491 = vmatprep.subr.mxu0 %v388
    %492 = vmatpush1.msra.mxu0 %v387
    %493 = vmatprep.subr.mxu0 %v393
    %494 = vmatpush1.msra.mxu0 %v392
    %495 = vmatprep.subr.mxu0 %v398
    %496 = vmatpush1.msra.mxu0 %v397
    %497 = vmatprep.subr.mxu0 %v403
    %498 = vmatpush1.msra.mxu0 %v402
    %499 = vmatprep.subr.mxu0 %v408
    %500 = vmatpush1.msra.mxu0 %v407
    %501 = vmatprep.subr.mxu0 %v413
    %502 = vmatpush1.msra.mxu0 %v412
    %503 = vmatprep.subr.mxu0 %v418
    %504 = vmatpush1.msra.mxu0 %v417
    %505 = vmatprep.subr.mxu0 %v423
    %506 = vmatpush1.msra.mxu0 %v422
    %507 = vmatprep.subr.mxu0 %v428
    %508 = vmatpush1.msra.mxu0 %v427
    %509 = vmatprep.subr.mxu0 %v433
    %510 = vmatpush1.msra.mxu0 %v432
    %511 = vmatprep.subr.mxu0 %v438
    %512 = vmatpush1.msra.mxu0 %v437
    %513 = vmatprep.subr.mxu0 %v443
    %514 = vmatpush1.msra.mxu0 %v442
    %515 = vmatprep.subr.mxu0 %v448
    %516 = vmatpush1.msra.mxu0 %v447
    %517 = vmatprep.subr.mxu0 %v453
    %518 = vmatpush1.msra.mxu0 %v452
    %519 = vmatprep.subr.mxu0 %v458
    %520 = vmatpush1.msra.mxu0 %v457
    %521 = vmatprep.subr.mxu0 0.0
    %522 = vmatpush1.msra.mxu0 0.0
    %523 = vmatprep.subr.mxu0 0.0
    %524 = vmatpush1.msra.mxu0 0.0
    %525 = vmatprep.subr.mxu0 0.0
    %526 = vmatpush1.msra.mxu0 0.0
    %527 = vmatprep.subr.mxu0 0.0
    %528 = vmatpush1.msra.mxu0 0.0
    %529 = vmatprep.subr.mxu0 0.0
    %530 = vmatpush1.msra.mxu0 0.0
    %531 = vmatprep.subr.mxu0 0.0
    %532 = vmatpush1.msra.mxu0 0.0
    %533 = vmatprep.subr.mxu0 0.0
    %534 = vmatpush1.msra.mxu0 0.0
    %535 = vmatprep.subr.mxu0 0.0
    %536 = vmatpush1.msra.mxu0 0.0
    %537 = vmatprep.subr.mxu0 0.0
    %538 = vmatpush1.msra.mxu0 0.0
    %539 = vmatprep.subr.mxu0 0.0
    %540 = vmatpush1.msra.mxu0 0.0
    %541 = vmatprep.subr.mxu0 0.0
    %542 = vmatpush1.msra.mxu0 0.0
    %543 = vmatprep.subr.mxu0 0.0
    %544 = vmatpush1.msra.mxu0 0.0
    %545 = vmatprep.subr.mxu0 0.0
    %546 = vmatpush1.msra.mxu0 0.0
    %547 = vmatprep.subr.mxu0 0.0
    %548 = vmatpush1.msra.mxu0 0.0
    %549 = vmatprep.subr.mxu0 0.0
    %550 = vmatpush1.msra.mxu0 0.0
    %551 = vmatprep.subr.mxu0 0.0
    %552 = vmatpush1.msra.mxu0 0.0
    %553 = vmatprep.mubr.f32.mxu0 0.0
    %554 = vmatmul.mubr.f32.gmra.mrb[0].mxu0 %v381
    %v555 = vpop.f32.mrb[0].mxu0
    %v556 = vadd.f32 %v467, %v555
    %v557 = vpop.f32.mrb[0].mxu0
    %v558 = vadd.f32 %v471, %v557
    %559 = vdwg.mxu0
    %560 = vmatprep.subr.mxu0 %v385
    %561 = vmatpush1.msra.mxu0 %v384
    %562 = vmatprep.subr.mxu0 %v390
    %563 = vmatpush1.msra.mxu0 %v389
    %564 = vmatprep.subr.mxu0 %v395
    %565 = vmatpush1.msra.mxu0 %v394
    %566 = vmatprep.subr.mxu0 %v400
    %567 = vmatpush1.msra.mxu0 %v399
    %568 = vmatprep.subr.mxu0 %v405
    %569 = vmatpush1.msra.mxu0 %v404
    %570 = vmatprep.subr.mxu0 %v410
    %571 = vmatpush1.msra.mxu0 %v409
    %572 = vmatprep.subr.mxu0 %v415
    %573 = vmatpush1.msra.mxu0 %v414
    %574 = vmatprep.subr.mxu0 %v420
    %575 = vmatpush1.msra.mxu0 %v419
    %576 = vmatprep.subr.mxu0 %v425
    %577 = vmatpush1.msra.mxu0 %v424
    %578 = vmatprep.subr.mxu0 %v430
    %579 = vmatpush1.msra.mxu0 %v429
    %580 = vmatprep.subr.mxu0 %v435
    %581 = vmatpush1.msra.mxu0 %v434
    %582 = vmatprep.subr.mxu0 %v440
    %583 = vmatpush1.msra.mxu0 %v439
    %584 = vmatprep.subr.mxu0 %v445
    %585 = vmatpush1.msra.mxu0 %v444
    %586 = vmatprep.subr.mxu0 %v450
    %587 = vmatpush1.msra.mxu0 %v449
    %588 = vmatprep.subr.mxu0 %v455
    %589 = vmatpush1.msra.mxu0 %v454
    %590 = vmatprep.subr.mxu0 %v460
    %591 = vmatpush1.msra.mxu0 %v459
    %592 = vmatprep.subr.mxu0 0.0
    %593 = vmatpush1.msra.mxu0 0.0
    %594 = vmatprep.subr.mxu0 0.0
    %595 = vmatpush1.msra.mxu0 0.0
    %596 = vmatprep.subr.mxu0 0.0
    %597 = vmatpush1.msra.mxu0 0.0
    %598 = vmatprep.subr.mxu0 0.0
    %599 = vmatpush1.msra.mxu0 0.0
    %600 = vmatprep.subr.mxu0 0.0
    %601 = vmatpush1.msra.mxu0 0.0
    %602 = vmatprep.subr.mxu0 0.0
    %603 = vmatpush1.msra.mxu0 0.0
    %604 = vmatprep.subr.mxu0 0.0
    %605 = vmatpush1.msra.mxu0 0.0
    %606 = vmatprep.subr.mxu0 0.0
    %607 = vmatpush1.msra.mxu0 0.0
    %608 = vmatprep.subr.mxu0 0.0
    %609 = vmatpush1.msra.mxu0 0.0
    %610 = vmatprep.subr.mxu0 0.0
    %611 = vmatpush1.msra.mxu0 0.0
    %612 = vmatprep.subr.mxu0 0.0
    %613 = vmatpush1.msra.mxu0 0.0
    %614 = vmatprep.subr.mxu0 0.0
    %615 = vmatpush1.msra.mxu0 0.0
    %616 = vmatprep.subr.mxu0 0.0
    %617 = vmatpush1.msra.mxu0 0.0
    %618 = vmatprep.subr.mxu0 0.0
    %619 = vmatpush1.msra.mxu0 0.0
    %620 = vmatprep.subr.mxu0 0.0
    %621 = vmatpush1.msra.mxu0 0.0
    %622 = vmatprep.subr.mxu0 0.0
    %623 = vmatpush1.msra.mxu0 0.0
    %624 = vmatprep.mubr.f32.mxu0 0.0
    %625 = vmatmul.mubr.f32.gmra.mrb[0].mxu0 %v381
    %v626 = vpop.f32.mrb[0].mxu0
    %v627 = vadd.f32 %v475, %v626
    %v628 = vpop.f32.mrb[0].mxu0
    %v629 = vadd.f32 %v479, %v628
    %630 = vdwg.mxu0
    %631 = vmatprep.subr.mxu0 0.0
    %632 = vmatpush1.msra.mxu0 %v386
    %633 = vmatprep.subr.mxu0 0.0
    %634 = vmatpush1.msra.mxu0 %v391
    %635 = vmatprep.subr.mxu0 0.0
    %636 = vmatpush1.msra.mxu0 %v396
    %637 = vmatprep.subr.mxu0 0.0
    %638 = vmatpush1.msra.mxu0 %v401
    %639 = vmatprep.subr.mxu0 0.0
    %640 = vmatpush1.msra.mxu0 %v406
    %641 = vmatprep.subr.mxu0 0.0
    %642 = vmatpush1.msra.mxu0 %v411
    %643 = vmatprep.subr.mxu0 0.0
    %644 = vmatpush1.msra.mxu0 %v416
    %645 = vmatprep.subr.mxu0 0.0
    %646 = vmatpush1.msra.mxu0 %v421
    %647 = vmatprep.subr.mxu0 0.0
    %648 = vmatpush1.msra.mxu0 %v426
    %649 = vmatprep.subr.mxu0 0.0
    %650 = vmatpush1.msra.mxu0 %v431
    %651 = vmatprep.subr.mxu0 0.0
    %652 = vmatpush1.msra.mxu0 %v436
    %653 = vmatprep.subr.mxu0 0.0
    %654 = vmatpush1.msra.mxu0 %v441
    %655 = vmatprep.subr.mxu0 0.0
    %656 = vmatpush1.msra.mxu0 %v446
    %657 = vmatprep.subr.mxu0 0.0
    %658 = vmatpush1.msra.mxu0 %v451
    %659 = vmatprep.subr.mxu0 0.0
    %660 = vmatpush1.msra.mxu0 %v456
    %661 = vmatprep.subr.mxu0 0.0
    %662 = vmatpush1.msra.mxu0 %v461
    %663 = vmatprep.subr.mxu0 0.0
    %664 = vmatpush1.msra.mxu0 0.0
    %665 = vmatprep.subr.mxu0 0.0
    %666 = vmatpush1.msra.mxu0 0.0
    %667 = vmatprep.subr.mxu0 0.0
    %668 = vmatpush1.msra.mxu0 0.0
    %669 = vmatprep.subr.mxu0 0.0
    %670 = vmatpush1.msra.mxu0 0.0
    %671 = vmatprep.subr.mxu0 0.0
    %672 = vmatpush1.msra.mxu0 0.0
    %673 = vmatprep.subr.mxu0 0.0
    %674 = vmatpush1.msra.mxu0 0.0
    %675 = vmatprep.subr.mxu0 0.0
    %676 = vmatpush1.msra.mxu0 0.0
    %677 = vmatprep.subr.mxu0 0.0
    %678 = vmatpush1.msra.mxu0 0.0
    %679 = vmatprep.subr.mxu0 0.0
    %680 = vmatpush1.msra.mxu0 0.0
    %681 = vmatprep.subr.mxu0 0.0
    %682 = vmatpush1.msra.mxu0 0.0
    %683 = vmatprep.subr.mxu0 0.0
    %684 = vmatpush1.msra.mxu0 0.0
    %685 = vmatprep.subr.mxu0 0.0
    %686 = vmatpush1.msra.mxu0 0.0
    %687 = vmatprep.subr.mxu0 0.0
    %688 = vmatpush1.msra.mxu0 0.0
    %689 = vmatprep.subr.mxu0 0.0
    %690 = vmatpush1.msra.mxu0 0.0
    %691 = vmatprep.subr.mxu0 0.0
    %692 = vmatpush1.msra.mxu0 0.0
    %693 = vmatprep.subr.mxu0 0.0
    %694 = vmatpush1.msra.mxu0 0.0
    %695 = vmatprep.mubr.f32.mxu0 0.0
    %696 = vmatmul.mubr.f32.gmra.mrb[0].mxu0 %v381
    %v697 = vpop.f32.mrb[0].mxu0
    %v698 = vadd.f32 %v483, %v697
    %v699 = vpop.f32.mrb[0].mxu0
    %700 = vdwg.mxu0
    %701 = vst [vmem:[#allocation12] sm:$0xff] %v556
    %702 = vst [vmem:[#allocation12 + $0x8] sm:$0xff] %v558
    %703 = vst [vmem:[#allocation12 + $0x10] sm:$0xff] %v627
    %704 = vst [vmem:[#allocation12 + $0x18] sm:$0xff] %v629
    %705 = vst [vmem:[#allocation12 + $0x20] sm:$0xff] %v698
    // Predicated region
    $region58: #{dynamics_network_forward.1} parent=1 // pred_check
      _
    $region59: #{dynamics_network_forward.1} parent=1 // pred_check_branch
      %707 = sbr.rel (0) target = $region61
    $region60: #{dynamics_network_forward.1} parent=1 // pred_region
      %s709 = ssub.s32 128, 128
      %710 = vsyncadd [#allocation4], %s709
      %s712 = sshll.u32 [#allocation11], 4
      %s713 = int_to_ptr.vmem [resolvable:$true] %s712
      %715 = dma.vmem_to_hbm [thread:$0]  %s713, 128, %s9, [#allocation4]
    $region61: #{dynamics_network_forward.1} parent=1 // pred_fallthru
      _
    // Predicated region
    $region62: #{dynamics_network_forward.1} parent=1 // pred_check
      _
    $region63: #{dynamics_network_forward.1} parent=1 // pred_check_branch
      %717 = sbr.rel (0) target = $region65
    $region64: #{dynamics_network_forward.1} parent=1 // pred_region
      %s719 = ssub.s32 640, 640
      %720 = vsyncadd [#allocation13], %s719
      %s722 = sshll.u32 [#allocation12], 4
      %s723 = int_to_ptr.vmem [resolvable:$true] %s722
      %725 = dma.vmem_to_hbm [thread:$0]  %s723, 640, %s10, [#allocation13]
    $region65: #{dynamics_network_forward.1} parent=1 // pred_fallthru
      _
    // Predicated region
    $region66: #{dynamics_network_forward.1} parent=1 // pred_check
      _
    $region67: #{dynamics_network_forward.1} parent=1 // pred_check_branch
      %727 = sbr.rel (0) target = $region69
    $region68: #{dynamics_network_forward.1} parent=1 // pred_region
      %728 = dma.done [#allocation4], 128
    $region69: #{dynamics_network_forward.1} parent=1 // pred_fallthru
      _
    // Predicated region
    $region70: #{dynamics_network_forward.1} parent=1 // pred_check
      _
    $region71: #{dynamics_network_forward.1} parent=1 // pred_check_branch
      %730 = sbr.rel (0) target = $region73
    $region72: #{dynamics_network_forward.1} parent=1 // pred_region
      %731 = dma.done [#allocation13], 640
    $region73: #{dynamics_network_forward.1} parent=1 // pred_fallthru
      _
    %732 = vsyncpa [#allocation3], 1
    %733 = vsyncpa [#allocation6], 1
    %734 = vsyncpa [#allocation9], 1
    %735 = vsyncpa [#allocation4], 1
    %736 = vsyncpa [#allocation13], 1

</llo_original>
